<compile_context>
chip_gen: v7x
topology: tpu7x:2x2x1
jax: 0.10.0
libtpu: 0.0.40
codegen_flags: <defaults>
</compile_context>

<pallas_src>
import functools

import jax
import jax.numpy as jnp
from jax import lax
from jax.experimental import pallas as pl
from jax.experimental.pallas import tpu as pltpu

_NEG = -1e9          # "no edge" sentinel (kept in f32 everywhere it is compared)


def _round_up(x, m):
    return ((x + m - 1) // m) * m


def _pad_to(a, shape, fill=0.0):
    pads = [(0, s - d) for d, s in zip(a.shape, shape)]
    if all(p[1] == 0 for p in pads):
        return a
    return jnp.pad(a, pads, constant_values=fill)


@functools.lru_cache(maxsize=None)
def _vmem_budget_bytes():
    """Per-generation VMEM budget: half of physical VMEM, capped at 64 MiB.
    v5e/v6e (128 MiB) -> 64 MiB, v7x (64 MiB) -> 32 MiB, unknown -> 32 MiB."""
    try:
        cap = int(pltpu.get_tpu_info().vmem_capacity_bytes)
    except Exception:
        cap = 64 << 20          # conservative (v7x-like) fallback
    return max(32 << 20, min(cap // 2, 64 << 20))


_PIPELINE_MODE_OK = None


def _probe_kernel(x_ref, o_ref):
    o_ref[...] = x_ref[...]


def _pipeline_mode_ok():
    """Probe once whether pallas_call honors BlockSpec(pipeline_mode=pl.Buffered(n))."""
    global _PIPELINE_MODE_OK
    if _PIPELINE_MODE_OK is None:
        try:
            spec = pl.BlockSpec((8, 128), lambda i: (0, 0),
                                pipeline_mode=pl.Buffered(1))
            out = pl.pallas_call(
                _probe_kernel,
                out_shape=jax.ShapeDtypeStruct((8, 128), jnp.float32),
                grid=(1,),
                in_specs=[spec],
                out_specs=pl.BlockSpec((8, 128), lambda i: (0, 0)),
            )(jnp.zeros((8, 128), jnp.float32))
            jax.block_until_ready(out)
            _PIPELINE_MODE_OK = True
        except Exception:
            _PIPELINE_MODE_OK = False
    return _PIPELINE_MODE_OK


def _bspec(block_shape, index_map, *, buffers=None):
    """BlockSpec with an explicit buffer-count hint when supported.
    buffers=1 single-buffers index-constant operands (VMEM saving); >2 deepens the
    pipeline for streamed operands.  Plain BlockSpec on older jax."""
    if buffers is not None and _pipeline_mode_ok():
        return pl.BlockSpec(block_shape, index_map, pipeline_mode=pl.Buffered(buffers))
    return pl.BlockSpec(block_shape, index_map)


# ----------------------------------------------------------------------------
# Pallas kernels
# ----------------------------------------------------------------------------
def _matmul_kernel(x_ref, w_ref, o_ref):
    """o_tile = x_tile @ w_tile (bf16 in, f32 accumulate)."""
    o_ref[...] = jnp.dot(x_ref[...], w_ref[...], preferred_element_type=jnp.float32)


def _matmul_bias_kernel(x_ref, w_ref, b_ref, o_ref):
    """o_tile = x_tile @ w_tile + b_tile (bias broadcast over rows)."""
    o_ref[...] = (
        jnp.dot(x_ref[...], w_ref[...], preferred_element_type=jnp.float32)
        + b_ref[...]
    )


def _gat_softmax_agg_kernel(logits_ref, wh_ref, b_ref, o_ref):
    """out_rows = ELU( softmax_row(logits_rows) @ Wh + b ); empty rows -> ELU(b)."""
    L = logits_ref[...]                                   # (tm, Nc)  f32 [dst, src]
    m = jnp.max(L, axis=-1, keepdims=True)
    has_edge = m > (_NEG * 0.5)
    m_safe = jnp.where(has_edge, m, 0.0)
    p = jnp.where(L > (_NEG * 0.5), jnp.exp(L - m_safe), 0.0)
    denom = jnp.sum(p, axis=-1, keepdims=True)
    # approx=False: exact reciprocal so attention weights match an f32 reference
    inv = pl.reciprocal(jnp.where(denom > 0.0, denom, 1.0), approx=False)
    alpha = p * inv                                       # per-dst softmax (f32)
    out = (
        jnp.dot(alpha.astype(jnp.bfloat16), wh_ref[...],
                preferred_element_type=jnp.float32)
        + b_ref[...]
    )
    # ELU(alpha=1.0)
    o_ref[...] = jnp.where(out > 0.0, out, jnp.exp(jnp.minimum(out, 0.0)) - 1.0)


def _make_rescal_kernel(col_resident, t):
    """score[r, i_tile, j_tile] = (E_row @ M_r) @ E_col^T with E_row@M_r cached over j."""
    def kernel(e_row_ref, m_ref, e_col_ref, o_ref, tmp_ref):
        j = pl.program_id(2)

        @pl.when(j == 0)
        def _():
            # bf16 scratch, quantized once per (r, i) row-tile instead of every j.
            # TODO(synk): keep an f32 scratch if double-bf16-rounding vs an f32
            # reference matters more than the VMEM/VPU saving.
            tmp_ref[...] = jnp.dot(
                e_row_ref[...], m_ref[0],
                preferred_element_type=jnp.float32).astype(jnp.bfloat16)

        if col_resident:
            # E fully VMEM-resident: slice the j-th column tile in place.
            e_col = e_col_ref[pl.ds(pl.multiple_of(j * t, 128), t), :]
        else:
            e_col = e_col_ref[...]
        # NT matmul: contract last dims of tmp and E_col (no materialized transpose).
        o_ref[0] = lax.dot_general(
            tmp_ref[...], e_col,
            dimension_numbers=(((1,), (1,)), ((), ())),
            preferred_element_type=jnp.float32,
        ).astype(o_ref.dtype)
    return kernel


# ----------------------------------------------------------------------------
# Pallas wrappers (tiling + padding + slicing)
# ----------------------------------------------------------------------------
def pallas_matmul(x, w, b=None, *, tm_max=256, tn_max=512,
                  x_buffers=None, w_buffers=None):
    """Tiled (M, K) @ (K, N) [+ b], bf16 operands, f32 output.
    Weights should be pre-cast to bf16 (no per-forward cast pass)."""
    M, K = x.shape
    K2, N = w.shape
    assert K == K2
    # bf16 packs (16, 128) per vreg -> round sublane dims to 16, lane dims to 128
    tm = min(tm_max, _round_up(M, 16))
    tn = min(tn_max, _round_up(N, 128))
    Mp, Np, Kp = _round_up(M, tm), _round_up(N, tn), _round_up(K, 16)

    xp = _pad_to(x.astype(jnp.bfloat16), (Mp, Kp))
    wp = _pad_to(w.astype(jnp.bfloat16), (Kp, Np))

    n_row_tiles, n_col_tiles = Mp // tm, Np // tn
    if w_buffers is not None:
        w_buffers = max(1, min(w_buffers, n_col_tiles))

    in_specs = [
        _bspec((tm, Kp), lambda i, j: (i, 0), buffers=x_buffers),
        _bspec((Kp, tn), lambda i, j: (0, j), buffers=w_buffers),
    ]
    args = [xp, wp]
    if b is not None:
        bp = _pad_to(b.reshape(1, -1).astype(jnp.float32), (1, Np))
        in_specs.append(pl.BlockSpec((1, tn), lambda i, j: (0, j)))
        args.append(bp)
        kernel = _matmul_bias_kernel
    else:
        kernel = _matmul_kernel

    flops = 2 * Mp * Np * Kp
    # x row-tiles are fetched once; w column-tiles are re-streamed once per row tile
    bytes_accessed = xp.size * 2 + wp.size * 2 * n_row_tiles + Mp * Np * 4

    out = pl.pallas_call(
        kernel,
        out_shape=jax.ShapeDtypeStruct((Mp, Np), jnp.float32),
        grid=(n_row_tiles, n_col_tiles),
        in_specs=in_specs,
        out_specs=pl.BlockSpec((tm, tn), lambda i, j: (i, j)),
        compiler_params=pltpu.CompilerParams(
            dimension_semantics=("parallel", "parallel"),
            vmem_limit_bytes=_vmem_budget_bytes()),
        cost_estimate=pl.CostEstimate(
            flops=int(flops), transcendentals=0, bytes_accessed=int(bytes_accessed)),
    )(*args)
    return out[:M, :N]


def pallas_gat_aggregate(edge_dst, edge_src, edge_logit, wh, bias, n, *, tm_max=256):
    """Row-tiled softmax over destination rows + alpha @ Wh + bias + ELU.
    Dense logits are built directly at the padded (Nr, Nc) shape (no extra pad pass).
    # TODO(synk): for large sparse graphs replace with an edge-list segment-softmax
    # (sort by dst + PrefetchScalarGridSpec offsets) so traffic scales with E, not N^2.
    """
    D = wh.shape[1]
    Nc = _round_up(n, 128)           # source (column / Wh-row) axis
    Dp = _round_up(D, 128)

    budget = _vmem_budget_bytes()
    # VMEM: Wh resident (x1, Buffered(1)) + bias, logits tile x2, out tile x2.
    fixed = Nc * Dp * 2 + Dp * 4
    per_row = Nc * 4 * 2 + Dp * 4 * 2
    tm_fit = max(8, ((budget - fixed) // max(per_row, 1)) // 8 * 8)
    tm = max(8, min(tm_max, _round_up(n, 8), tm_fit))     # v7x-safe row tile
    Nr = _round_up(n, tm)            # padded destination (row) axis

    # parallel edges between the same (dst, src) pair collapse (last write wins)
    logits_p = jnp.full((Nr, Nc), _NEG, jnp.float32).at[edge_dst, edge_src].set(edge_logit)
    wh_p = _pad_to(wh.astype(jnp.bfloat16), (Nc, Dp))
    bias_p = _pad_to(bias.reshape(1, -1).astype(jnp.float32), (1, Dp))

    out = pl.pallas_call(
        _gat_softmax_agg_kernel,
        out_shape=jax.ShapeDtypeStruct((Nr, Dp), jnp.float32),
        grid=(Nr // tm,),
        in_specs=[
            pl.BlockSpec((tm, Nc), lambda i: (i, 0)),
            _bspec((Nc, Dp), lambda i: (0, 0), buffers=1),   # Wh resident, single copy
            _bspec((1, Dp), lambda i: (0, 0), buffers=1),
        ],
        out_specs=pl.BlockSpec((tm, Dp), lambda i: (i, 0)),
        compiler_params=pltpu.CompilerParams(
            dimension_semantics=("parallel",),
            vmem_limit_bytes=budget),
        cost_estimate=pl.CostEstimate(
            flops=int(2 * Nr * Nc * Dp),
            transcendentals=int(Nr * Nc),
            bytes_accessed=int(Nr * Nc * 4 + Nc * Dp * 2 + Nr * Dp * 4)),
    )(logits_p, wh_p, bias_p)
    return out[:n, :D]


def pallas_rescal(entities_emb, relation_matrices, *, tile=512, out_dtype=jnp.float32):
    """score[r] = E @ M_r @ E^T, tiled over (relation, row-tile, col-tile).
    The column copy of E is kept fully VMEM-resident (single-buffered) when the
    per-generation VMEM budget allows; otherwise it is streamed per column tile."""
    N, D = entities_emb.shape
    R = relation_matrices.shape[0]
    t = min(tile, _round_up(N, 128))           # tile edge: 128-multiple (lane dense)
    Np = _round_up(N, t)
    Dp = _round_up(D, 128)
    nt = Np // t
    out_isz = jnp.dtype(out_dtype).itemsize

    e_p = _pad_to(entities_emb.astype(jnp.bfloat16), (Np, Dp))
    m_p = _pad_to(relation_matrices.astype(jnp.bfloat16), (R, Dp, Dp))

    budget = _vmem_budget_bytes()
    # conservative (double-buffered) accounting for the residency decision
    resident_bytes = (2 * Np * Dp * 2          # E_col fully resident
                      + 2 * t * Dp * 2         # E_row tile
                      + 2 * Dp * Dp * 2        # M_r
                      + 2 * t * t * out_isz    # out tile
                      + t * Dp * 2)            # bf16 scratch (E_row @ M_r)
    col_resident = resident_bytes <= budget

    if col_resident:
        e_col_spec = _bspec((Np, Dp), lambda r, i, j: (0, 0), buffers=1)
        e_col_reads = Np * Dp * 2
    else:
        e_col_spec = pl.BlockSpec((t, Dp), lambda r, i, j: (j, 0))
        e_col_reads = R * nt * Np * Dp * 2

    flops = 2 * R * nt * t * Dp * Dp + 2 * R * Np * Np * Dp
    bytes_accessed = (R * Dp * Dp * 2 + R * nt * t * Dp * 2 + e_col_reads
                      + R * Np * Np * out_isz)

    score = pl.pallas_call(
        _make_rescal_kernel(col_resident, t),
        out_shape=jax.ShapeDtypeStruct((R, Np, Np), out_dtype),
        grid=(R, nt, nt),
        in_specs=[
            pl.BlockSpec((t, Dp), lambda r, i, j: (i, 0)),                # E row tile
            _bspec((1, Dp, Dp), lambda r, i, j: (r, 0, 0), buffers=1),    # M_r (const over i, j)
            e_col_spec,
        ],
        out_specs=pl.BlockSpec((1, t, t), lambda r, i, j: (r, i, j)),
        scratch_shapes=[pltpu.VMEM((t, Dp), jnp.bfloat16)],               # tmp = E_row @ M_r
        compiler_params=pltpu.CompilerParams(
            dimension_semantics=("parallel", "parallel", "arbitrary"),
            vmem_limit_bytes=budget),
        cost_estimate=pl.CostEstimate(
            flops=int(flops), transcendentals=0, bytes_accessed=int(bytes_accessed)),
    )(e_p, m_p, e_p)
    return score[:, :N, :N]


# ----------------------------------------------------------------------------
# Model: parameter init + forward
# ----------------------------------------------------------------------------
def init_params(key, dim):
    def glorot(k, shape):
        fan_in, fan_out = shape[0], shape[-1]
        scale = jnp.sqrt(2.0 / (fan_in + fan_out))
        return jax.random.normal(k, shape, jnp.float32) * scale

    ks = jax.random.split(key, 8)
    w_gat = glorot(ks[0], (dim, dim))
    a_src = glorot(ks[1], (dim, 1))[:, 0]
    a_dst = glorot(ks[2], (dim, 1))[:, 0]
    # Fuse the additive attention vectors into the projection (two extra output
    # columns) and pre-cast all large weights to bf16 ONCE (no per-forward cast).
    w_gat_ext = jnp.concatenate(
        [w_gat, (w_gat @ a_src)[:, None], (w_gat @ a_dst)[:, None]], axis=1)
    return {
        "W_gat_ext": w_gat_ext.astype(jnp.bfloat16),                 # (D, D+2)
        "b_gat": jnp.zeros((dim,), jnp.float32),
        # GraphEncoder relation projection
        "W_rel": glorot(ks[3], (dim, dim)).astype(jnp.bfloat16),
        "b_rel": jnp.zeros((dim,), jnp.float32),
        # ReshapeRelation: Linear(dim -> dim*dim)
        "W_reshape": glorot(ks[4], (dim, dim * dim)).astype(jnp.bfloat16),
        "b_reshape": jnp.zeros((dim * dim,), jnp.float32),
    }


def graph_encoder_decoder_forward(params, entities, relations, x_coo, *,
                                  score_dtype=jnp.float32):
    N, D = entities.shape
    R = relations.shape[0]

    # --- top-level plumbing (same as the torch module) ---
    edge_index = x_coo[:, jnp.array([0, 2])].T      # (2, E): row0=src(head), row1=dst(tail)
    relation_index = x_coo[:, 1]                    # (E,)
    # TODO(synk): if the original GraphEncoder mixes relation embeddings into the edge
    # attention logit, relation_index should feed it; this 1-head GAT drops it.
    del relation_index

    # --- GraphEncoder: entities (GAT layer) ---
    # One fused MXU pass: columns [0:D] = Wh, column D = Wh@a_src, D+1 = Wh@a_dst.
    proj = pallas_matmul(entities, params["W_gat_ext"])               # (N, D+2)
    wh = proj[:, :D]
    s_src = proj[:, D]
    s_dst = proj[:, D + 1]
    src, dst = edge_index[0], edge_index[1]
    e_logit = s_src[src] + s_dst[dst]
    e_logit = jnp.where(e_logit > 0.0, e_logit, 0.2 * e_logit)        # LeakyReLU(0.2)
    # dropout: eval mode (identity)
    entities_emb = pallas_gat_aggregate(dst, src, e_logit, wh, params["b_gat"], N)

    # --- GraphEncoder: relations (linear projection) ---
    relations_emb = pallas_matmul(relations, params["W_rel"], params["b_rel"],
                                  x_buffers=1)                         # (R, D)

    # --- ReshapeRelation: (R, D) -> (R, D, D) ---
    # skinny (R x D) @ (D x D^2): large, deep-buffered weight column tiles (HBM-bound)
    rel_flat = pallas_matmul(relations_emb, params["W_reshape"], params["b_reshape"],
                             tn_max=2048, x_buffers=1, w_buffers=3)
    relation_matrices = rel_flat.reshape(R, D, D)

    # --- RESCAL decoder: score[r, i, j] = e_i^T M_r e_j ---
    # (pass score_dtype=jnp.bfloat16 to halve the dominant R*N^2 writeback if the
    #  downstream consumer tolerates bf16 scores)
    score = pallas_rescal(entities_emb, relation_matrices, out_dtype=score_dtype)
    return score


# ----------------------------------------------------------------------------
# Demo
# ----------------------------------------------------------------------------
if __name__ == "__main__":
    D = 16       # embedding dim (kept small; original default is 768)
    N_ENT = 8
    N_REL = 4
    N_EDGE = 12

    key = jax.random.PRNGKey(0)
    k_ent, k_rel, k_h, k_r, k_t = jax.random.split(key, 5)
    entities = jax.random.normal(k_ent, (N_ENT, D), jnp.float32)
    relations = jax.random.normal(k_rel, (N_REL, D), jnp.float32)
    heads = jax.random.randint(k_h, (N_EDGE,), 0, N_ENT, jnp.int32)
    rels = jax.random.randint(k_r, (N_EDGE,), 0, N_REL, jnp.int32)
    tails = jax.random.randint(k_t, (N_EDGE,), 0, N_ENT, jnp.int32)
    x_coo = jnp.stack([heads, rels, tails], axis=1)          # (E, 3) int32

    params = init_params(jax.random.PRNGKey(42), D)

    score = graph_encoder_decoder_forward(params, entities, relations, x_coo)
    score = jax.block_until_ready(score)

    assert score.shape == (N_REL, N_ENT, N_ENT)
    assert bool(jnp.all(jnp.isfinite(score)))
    print("KERNEL_OK")
</pallas_src>

<mosaic_0001>
module attributes {stable_mosaic.version = 11 : i64} {
  func.func @_matmul_kernel(%arg0: i32, %arg1: i32, %arg2: memref<16x16xbf16, #tpu.memory_space<vmem>>, %arg3: memref<16x128xbf16, #tpu.memory_space<vmem>>, %arg4: memref<16x128xf32, #tpu.memory_space<vmem>>) attributes {dimension_semantics = [#tpu.dimension_semantics<parallel>, #tpu.dimension_semantics<parallel>], iteration_bounds = array<i64: 1, 1>, scalar_prefetch = 0 : i64, scratch_operands = 0 : i64, tpu.core_type = #tpu.core_type<tc>, window_params = [{transform_indices = @transform_0, window_bounds = array<i64: 16, 16>}, {transform_indices = @transform_1, window_bounds = array<i64: 16, 128>}, {transform_indices = @transform_2, window_bounds = array<i64: 16, 128>}]} {
    %c0 = arith.constant 0 : index
    %c0_0 = arith.constant 0 : index
    %0 = vector.load %arg2[%c0, %c0_0] : memref<16x16xbf16, #tpu.memory_space<vmem>>, vector<16x16xbf16>
    %c0_1 = arith.constant 0 : index
    %c0_2 = arith.constant 0 : index
    %1 = vector.load %arg3[%c0_1, %c0_2] : memref<16x128xbf16, #tpu.memory_space<vmem>>, vector<16x128xbf16>
    %cst = arith.constant dense<0.000000e+00> : vector<16x128xf32>
    %2 = tpu.matmul %0, %1, %cst {dimension_numbers = #tpu.dot_dimension_numbers<[1], [0], [0], [1], [0, 0, 1, 1], [], []>} : vector<16x16xbf16>, vector<16x128xbf16>, vector<16x128xf32> -> vector<16x128xf32>
    %c0_3 = arith.constant 0 : index
    %c0_4 = arith.constant 0 : index
    %3 = vector.load %arg4[%c0_3, %c0_4] : memref<16x128xf32, #tpu.memory_space<vmem>>, vector<16x128xf32>
    tpu.vector_store %arg4[%c0_3, %c0_4], %2 {strides = array<i32>} : memref<16x128xf32, #tpu.memory_space<vmem>>, vector<16x128xf32>,
    return
  }
  func.func @transform_0(%arg0: i32, %arg1: i32) -> (i32, i32) {
    %c0_i32 = arith.constant 0 : i32
    %c0_i32_0 = arith.constant 0 : i32
    return %arg0, %c0_i32 : i32, i32
  }
  func.func @transform_1(%arg0: i32, %arg1: i32) -> (i32, i32) {
    %c0_i32 = arith.constant 0 : i32
    %c0_i32_0 = arith.constant 0 : i32
    return %c0_i32, %arg1 : i32, i32
  }
  func.func @transform_2(%arg0: i32, %arg1: i32) -> (i32, i32) {
    %c0_i32 = arith.constant 0 : i32
    return %arg0, %arg1 : i32, i32
  }
}

</mosaic_0001>

<llo_original>
// kernel: tpu_custom_call.1
$region0: #{tpu_custom_call.1}
  #allocation0 [shape = 'u32[]', space=smem, size = 0x4, offset = 0x4, fixed_abs, tag = 'smem constant byte address 0x4 - core index']
  #allocation1 [shape = 'u32[144,128]{1,0:T(1,128)}', space=vmem, size = 0x12000, scoped, tag = 'internal scratch']
  %s0 = inlined_call_operand.hbm [shape: bf16[16,16], index: 0, kind: input, shape index: {}]
  %s1 = inlined_call_operand.hbm [shape: bf16[16,128], index: 1, kind: input, shape index: {}]
  %s2 = inlined_call_operand.hbm [shape: f32[16,128], index: 2, kind: output, shape index: {}]
  %s3 = sld [smem:[#allocation0]]
  $region26: #{tpu_custom_call.1} parent=0
    _
  %s5 = ssub.s32 1, %s3
  %s6 = scalar_select 0, %s5, %s3
  $region1: #{tpu_custom_call.1} parent=0
    #allocation2 [shape = 'u8[4096]{0}', space=vmem, size = 0x1000, scoped, tag = 'input window, operand 0, single buffered']
    #allocation3 [shape = 's32[1]{0}', space=sflag, size = 0x4, scoped, tag = 'scoped memory for tpu_custom_call.1']
    #allocation4 [shape = 's32[1]{0}', space=sflag, size = 0x4, scoped, tag = 'scoped memory for tpu_custom_call.1']
    #allocation5 [shape = 'u8[4096]{0}', space=vmem, size = 0x1000, scoped, tag = 'input window, operand 1, single buffered']
    #allocation6 [shape = 's32[1]{0}', space=sflag, size = 0x4, scoped, tag = 'scoped memory for tpu_custom_call.1']
    #allocation7 [shape = 'u8[8192]{0}', space=vmem, size = 0x2000, scoped, tag = 'output window, operand 0, single buffered']
    %7 = vsyncpa [#allocation3], 0
    %8 = vsyncpa [#allocation6], 0
    %9 = vsyncpa [#allocation4], 0
    // Predicated region
    $region2: #{tpu_custom_call.1} parent=1 // pred_check
      _
    $region3: #{tpu_custom_call.1} parent=1 // pred_check_branch
      %11 = sbr.rel (0) target = $region5
    $region4: #{tpu_custom_call.1} parent=1 // pred_region
      %s13 = ssub.s32 128, 128
      %14 = vsyncadd [#allocation3], %s13
      %s15 = sshll.u32 [#allocation2], 4
      %s16 = int_to_ptr.vmem [resolvable:$true] %s15
      %21 = dma.hbm_to_vmem [thread:$0]  %s0, 128, %s16, [#allocation3], 64, 64, 4
    $region5: #{tpu_custom_call.1} parent=1 // pred_fallthru
      _
    // Predicated region
    $region6: #{tpu_custom_call.1} parent=1 // pred_check
      _
    $region7: #{tpu_custom_call.1} parent=1 // pred_check_branch
      %23 = sbr.rel (0) target = $region9
    $region8: #{tpu_custom_call.1} parent=1 // pred_region
      %s25 = ssub.s32 128, 128
      %26 = vsyncadd [#allocation6], %s25
      %s27 = sshll.u32 [#allocation5], 4
      %s28 = int_to_ptr.vmem [resolvable:$true] %s27
      %33 = dma.hbm_to_vmem [thread:$0]  %s1, 128, %s28, [#allocation6], 64, 64, 4
    $region9: #{tpu_custom_call.1} parent=1 // pred_fallthru
      _
    // Predicated region
    $region10: #{tpu_custom_call.1} parent=1 // pred_check
      _
    $region11: #{tpu_custom_call.1} parent=1 // pred_check_branch
      %35 = sbr.rel (0) target = $region13
    $region12: #{tpu_custom_call.1} parent=1 // pred_region
      %36 = dma.done [#allocation3], 128
    $region13: #{tpu_custom_call.1} parent=1 // pred_fallthru
      _
    // Predicated region
    $region14: #{tpu_custom_call.1} parent=1 // pred_check
      _
    $region15: #{tpu_custom_call.1} parent=1 // pred_check_branch
      %38 = sbr.rel (0) target = $region17
    $region16: #{tpu_custom_call.1} parent=1 // pred_region
      %39 = dma.done [#allocation6], 128
    $region17: #{tpu_custom_call.1} parent=1 // pred_fallthru
      _
    %v41 = vld [vmem:[#allocation2] sm:$0xf]
    %v42 = vld [vmem:[#allocation2 + $0x4] sm:$0xf]
    %v43 = vld [vmem:[#allocation5] sm:$0xf]
    %v44 = vld [vmem:[#allocation5 + $0x4] sm:$0xf]
    %v47 = vunpack.c.l.b16 %v41
    %v48 = vunpack.c.l.b16 %v42
    %v49 = vpack.c.b16 %v48, %v47
    %v52 = vunpack.c.l.b16 %v43
    %v53 = vunpack.c.l.b16 %v44
    %v54 = vpack.c.b16 %v53, %v52
    %vm56 = vcmask 130048
    %v58 = vsel %vm56, %v49, 0
    %60 = vmatprep.subr.bf16.mxu0 0
    %61 = vmatpush1.bf16.msra.mxu0 %v54
    %62 = vmatprep.subr.bf16.mxu0 0
    %63 = vmatpush1.bf16.msra.mxu0 0
    %64 = vmatprep.subr.bf16.mxu0 0
    %65 = vmatpush1.bf16.msra.mxu0 0
    %66 = vmatprep.subr.bf16.mxu0 0
    %67 = vmatpush1.bf16.msra.mxu0 0
    %68 = vmatprep.subr.bf16.mxu0 0
    %69 = vmatpush1.bf16.msra.mxu0 0
    %70 = vmatprep.subr.bf16.mxu0 0
    %71 = vmatpush1.bf16.msra.mxu0 0
    %72 = vmatprep.subr.bf16.mxu0 0
    %73 = vmatpush1.bf16.msra.mxu0 0
    %74 = vmatprep.subr.bf16.mxu0 0
    %75 = vmatpush1.bf16.msra.mxu0 0
    %76 = vmatprep.subr.bf16.mxu0 0
    %77 = vmatpush1.bf16.msra.mxu0 0
    %78 = vmatprep.subr.bf16.mxu0 0
    %79 = vmatpush1.bf16.msra.mxu0 0
    %80 = vmatprep.subr.bf16.mxu0 0
    %81 = vmatpush1.bf16.msra.mxu0 0
    %82 = vmatprep.subr.bf16.mxu0 0
    %83 = vmatpush1.bf16.msra.mxu0 0
    %84 = vmatprep.subr.bf16.mxu0 0
    %85 = vmatpush1.bf16.msra.mxu0 0
    %86 = vmatprep.subr.bf16.mxu0 0
    %87 = vmatpush1.bf16.msra.mxu0 0
    %88 = vmatprep.subr.bf16.mxu0 0
    %89 = vmatpush1.bf16.msra.mxu0 0
    %90 = vmatprep.subr.bf16.mxu0 0
    %91 = vmatpush1.bf16.msra.mxu0 0
    %92 = vmatprep.mubr.bf16.mxu0 0
    %93 = vmatmul.mubr.bf16.gmra.mrb[0].mxu0 %v58
    %v94 = vpop.f32.mrb[0].mxu0
    %v95 = vadd.f32 0.0, %v94
    %v96 = vpop.f32.mrb[0].mxu0
    %v97 = vpop.f32.mrb[0].mxu0
    %v98 = vadd.f32 0.0, %v97
    %v99 = vpop.f32.mrb[0].mxu0
    %100 = vdwg.mxu0
    %101 = vst [vmem:[#allocation7] sm:$0xff] %v95
    %102 = vst [vmem:[#allocation7 + $0x8] sm:$0xff] %v98
    // Predicated region
    $region18: #{tpu_custom_call.1} parent=1 // pred_check
      _
    $region19: #{tpu_custom_call.1} parent=1 // pred_check_branch
      %104 = sbr.rel (0) target = $region21
    $region20: #{tpu_custom_call.1} parent=1 // pred_region
      %s106 = ssub.s32 256, 256
      %107 = vsyncadd [#allocation4], %s106
      %s108 = sshll.u32 [#allocation7], 4
      %s109 = int_to_ptr.vmem [resolvable:$true] %s108
      %114 = dma.vmem_to_hbm [thread:$0]  %s109, 256, %s2, [#allocation4], 128, 128, 8
    $region21: #{tpu_custom_call.1} parent=1 // pred_fallthru
      _
    // Predicated region
    $region22: #{tpu_custom_call.1} parent=1 // pred_check
      _
    $region23: #{tpu_custom_call.1} parent=1 // pred_check_branch
      %116 = sbr.rel (0) target = $region25
    $region24: #{tpu_custom_call.1} parent=1 // pred_region
      %117 = dma.done [#allocation4], 256
    $region25: #{tpu_custom_call.1} parent=1 // pred_fallthru
      _
    %118 = vsyncpa [#allocation3], 1
    %119 = vsyncpa [#allocation6], 1
    %120 = vsyncpa [#allocation4], 1

</llo_original>
